<compile_context>
chip_gen: v7x
topology: tpu7x:2x2x1
jax: 0.10.0
libtpu: 0.0.40
codegen_flags: <defaults>
</compile_context>

<pallas_src>
import functools

import jax
import jax.numpy as jnp
from jax.experimental import pallas as pl
from jax.experimental.pallas import tpu as pltpu

_LANE = 128            # row tiles are multiples of the lane width
_SUBLANE_BF16 = 16     # bf16 sublane packing: feature/hidden dims round to this
_TILE_R_MAX = 2048     # max rows per grid step


def _round_up(x, m):
    return (x + m - 1) // m * m


def _shared_critic_kernel(xt_ref, w1_ref, b1_ref, w2_ref, b2_ref, wq_ref,
                          o_ref):
    xt = xt_ref[...]                                             # (Dp, T) bf16
    # fc1 + ReLU -> (Hp, T); MXU matmul, f32 accumulation.
    h1 = jnp.dot(w1_ref[...], xt, preferred_element_type=jnp.float32)
    h1 = jnp.maximum(h1 + b1_ref[...], 0.0)
    # fc2 + ReLU -> (Hp, T).
    h2 = jnp.dot(w2_ref[...], h1.astype(jnp.bfloat16),
                 preferred_element_type=jnp.float32)
    h2 = jnp.maximum(h2 + b2_ref[...], 0.0)
    # q_value (out_features == 1): VPU multiply + sublane reduction instead of
    # a degenerate N=1 MXU matvec; result is lane-dense (1, T).
    q = jnp.sum(h2 * wq_ref[...], axis=0, keepdims=True)
    o_ref[...] = q[None].astype(o_ref.dtype)                     # (1, 1, T)


def init_params(key, in_dim, hidden):
    """PyTorch nn.Linear default init, natural (in, out) f32 layout."""
    def linear(key, fan_in, fan_out):
        kw, kb = jax.random.split(key)
        bound = 1.0 / jnp.sqrt(jnp.float32(fan_in))
        w = jax.random.uniform(kw, (fan_in, fan_out), jnp.float32, -bound, bound)
        b = jax.random.uniform(kb, (fan_out,), jnp.float32, -bound, bound)
        return w, b

    k1, k2, k3 = jax.random.split(key, 3)
    w1, b1 = linear(k1, in_dim, hidden)
    w2, b2 = linear(k2, hidden, hidden)
    wq, bq = linear(k3, hidden, 1)
    return (w1, b1, w2, b2, wq, bq)


def pack_params(params, in_dim_pad, hidden_pad):
    """Zero-pad + transpose params into kernel layout (done once, outside jit).

    Weights become (out, in)-oriented (feature-major math), W1/W2 in bf16,
    biases and the final-layer column in f32.  Zero padding is numerically
    inert through ReLU and the final reduction.
    """
    w1, b1, w2, b2, wq, bq = params
    hidden = w2.shape[0]

    def pad2(a, r, c):
        return jnp.pad(a, ((0, r - a.shape[0]), (0, c - a.shape[1])))

    w1_k = pad2(w1.T, hidden_pad, in_dim_pad).astype(jnp.bfloat16)   # (Hp, Dp)
    w2_k = pad2(w2.T, hidden_pad, hidden_pad).astype(jnp.bfloat16)   # (Hp, Hp)
    b1_k = jnp.pad(b1, (0, hidden_pad - hidden)).reshape(hidden_pad, 1)
    b2_k = jnp.pad(b2, (0, hidden_pad - hidden)).reshape(hidden_pad, 1)
    wq_k = pad2(wq, hidden_pad, 1).astype(jnp.float32)               # (Hp, 1)
    bq_k = bq.reshape(()).astype(jnp.float32)                        # scalar
    return (w1_k, b1_k.astype(jnp.float32), w2_k,
            b2_k.astype(jnp.float32), wq_k, bq_k)


@functools.partial(jax.jit, static_argnames=("num_agent",))
def shared_critic_forward(packed_params, global_state, private_state,
                          gov_action, hou_action, num_agent):
    w1_k, b1_k, w2_k, b2_k, wq_k, bq_k = packed_params
    hidden_pad, in_dim_pad = w1_k.shape

    B = global_state.shape[0]
    rows = B * num_agent

    # ---- Feature-major bf16 activation slab, built in one fused pass. ------
    # Row order r = b*num_agent + a matches torch's repeat + cat + flatten.
    def fm(x):            # (B, num_agent, d) -> (d, rows)
        return jnp.transpose(x, (2, 0, 1)).reshape(x.shape[-1], rows)

    def fm_bcast(x):      # (B, d) broadcast over agents -> (d, rows)
        return fm(jnp.broadcast_to(x[:, None, :],
                                   (B, num_agent, x.shape[-1])))

    pieces = [fm_bcast(global_state.astype(jnp.bfloat16)),
              fm(private_state.astype(jnp.bfloat16)),
              fm_bcast(gov_action.astype(jnp.bfloat16)),
              fm(hou_action.astype(jnp.bfloat16))]
    in_dim = sum(p.shape[0] for p in pieces)
    assert in_dim_pad >= in_dim, (in_dim_pad, in_dim)
    if in_dim_pad > in_dim:
        pieces.append(jnp.zeros((in_dim_pad - in_dim, rows), jnp.bfloat16))
    # TODO(synk): for large state_dim, pass the shared (global/gov) columns
    # separately with a split W1 instead of duplicating them num_agent times.

    # ---- Row tiling: large tiles; >=2 tiles when possible (v7x megacore). --
    rows128 = _round_up(rows, _LANE)
    if rows128 <= _LANE:
        tile_r = rows128
    else:
        tile_r = min(_TILE_R_MAX, _round_up(rows128 // 2, _LANE))
    rows_pad = _round_up(rows, tile_r)
    num_tiles = rows_pad // tile_r

    x_t = jnp.concatenate(pieces, axis=0)            # (Dp, rows) bf16
    if rows_pad > rows:
        x_t = jnp.pad(x_t, ((0, 0), (0, rows_pad - rows)))

    # Explicit VMEM budget (v5e scoped default is only 16 MiB).
    est = (2 * in_dim_pad * tile_r * 2                         # x_t, 2 bufs, bf16
           + 2 * 2 * hidden_pad * (in_dim_pad + hidden_pad)    # W1+W2 bf16, 2 bufs
           + 2 * 4 * (3 * hidden_pad)                          # b1,b2,wq f32, 2 bufs
           + 3 * hidden_pad * tile_r * 4                       # h1/h2/cast temps
           + 2 * tile_r * 4)                                   # out, 2 bufs
    vmem_limit = int(min(64 << 20, max(16 << 20, 2 * est)))

    const = lambda i: (0, 0)   # weights/biases stay VMEM-resident
    # TODO(synk): pipeline_mode=pl.Buffered(1) on the weight specs (and
    # Buffered(3) on x_t) would trim VMEM further on v7x; kept on the most
    # portable BlockSpec surface here.
    out = pl.pallas_call(
        _shared_critic_kernel,
        out_shape=jax.ShapeDtypeStruct((num_tiles, 1, tile_r), jnp.float32),
        grid=(num_tiles,),
        in_specs=[
            pl.BlockSpec((in_dim_pad, tile_r), lambda i: (0, i)),   # x_t tile
            pl.BlockSpec((hidden_pad, in_dim_pad), const),          # W1
            pl.BlockSpec((hidden_pad, 1), const),                   # b1
            pl.BlockSpec((hidden_pad, hidden_pad), const),          # W2
            pl.BlockSpec((hidden_pad, 1), const),                   # b2
            pl.BlockSpec((hidden_pad, 1), const),                   # wq
        ],
        out_specs=pl.BlockSpec((1, 1, tile_r), lambda i: (i, 0, 0)),
        compiler_params=pltpu.CompilerParams(
            dimension_semantics=("parallel",),
            vmem_limit_bytes=vmem_limit),
    )(x_t, w1_k, b1_k, w2_k, b2_k, wq_k)

    # q_value bias added here (kept out of the VMEM pipeline).
    q = out.reshape(rows_pad)[:rows] + bq_k
    return q.reshape(B, num_agent, 1)


def reference_forward(params, global_state, private_state, gov_action,
                      hou_action, num_agent):
    """Pure-JAX f32 reference of the PyTorch forward."""
    w1, b1, w2, b2, wq, bq = params
    B = global_state.shape[0]
    n_global = jnp.broadcast_to(global_state[:, None, :],
                                (B, num_agent, global_state.shape[-1]))
    n_gov = jnp.broadcast_to(gov_action[:, None, :],
                             (B, num_agent, gov_action.shape[-1]))
    inputs = jnp.concatenate([n_global, private_state, n_gov, hou_action],
                             axis=-1)
    h1 = jax.nn.relu(inputs @ w1 + b1)
    h2 = jax.nn.relu(h1 @ w2 + b2)
    return h2 @ wq + bq


def reference_forward_bf16(params, global_state, private_state, gov_action,
                           hou_action, num_agent):
    """Precision-matched reference (bf16 matmul operands, f32 accumulation,
    f32 elementwise final reduction — mirrors the kernel)."""
    w1, b1, w2, b2, wq, bq = params
    B = global_state.shape[0]
    n_global = jnp.broadcast_to(global_state[:, None, :],
                                (B, num_agent, global_state.shape[-1]))
    n_gov = jnp.broadcast_to(gov_action[:, None, :],
                             (B, num_agent, gov_action.shape[-1]))
    inputs = jnp.concatenate([n_global, private_state, n_gov, hou_action],
                             axis=-1)
    x = inputs.astype(jnp.bfloat16)
    h1 = jax.nn.relu(jnp.dot(x, w1.astype(jnp.bfloat16),
                             preferred_element_type=jnp.float32) + b1)
    h2 = jax.nn.relu(jnp.dot(h1.astype(jnp.bfloat16), w2.astype(jnp.bfloat16),
                             preferred_element_type=jnp.float32) + b2)
    return jnp.sum(h2 * wq[:, 0], axis=-1, keepdims=True) + bq


if __name__ == "__main__":
    # Small shapes consistent with the module.
    B = 2
    num_agent = 4
    global_dim = 6
    private_dim = 5
    gov_action_dim = 3
    hou_action_dim = 2
    hidden_size = 32
    in_dim = global_dim + private_dim + gov_action_dim + hou_action_dim

    key = jax.random.PRNGKey(0)
    kp, kg, kpr, kga, kha = jax.random.split(key, 5)

    params = init_params(kp, in_dim, hidden_size)
    packed = pack_params(params,
                         in_dim_pad=_round_up(in_dim, _SUBLANE_BF16),
                         hidden_pad=_round_up(hidden_size, _SUBLANE_BF16))

    global_state = jax.random.normal(kg, (B, global_dim), jnp.float32)
    private_state = jax.random.normal(kpr, (B, num_agent, private_dim),
                                      jnp.float32)
    gov_action = jax.random.normal(kga, (B, gov_action_dim), jnp.float32)
    hou_action = jax.random.normal(kha, (B, num_agent, hou_action_dim),
                                   jnp.float32)

    out = shared_critic_forward(packed, global_state, private_state,
                                gov_action, hou_action, num_agent)
    out = jax.block_until_ready(out)

    ref_bf16 = reference_forward_bf16(params, global_state, private_state,
                                      gov_action, hou_action, num_agent)
    ref_f32 = reference_forward(params, global_state, private_state,
                                gov_action, hou_action, num_agent)

    assert out.shape == (B, num_agent, 1)
    # Tight check against the precision-matched reference (verifies plumbing).
    assert jnp.allclose(out, ref_bf16, atol=1e-3, rtol=1e-3), \
        float(jnp.max(jnp.abs(out - ref_bf16)))
    # Loose check against the full-f32 module semantics (activations are bf16
    # in the kernel — a documented precision deviation acceptable for an RL
    # critic; expected error is O(1e-3)..O(1e-2) absolute).
    assert jnp.allclose(out, ref_f32, atol=5e-2, rtol=5e-2), \
        float(jnp.max(jnp.abs(out - ref_f32)))

    print("KERNEL_OK")
</pallas_src>

<mosaic_0001>
module attributes {stable_mosaic.version = 11 : i64} {
  func.func @_shared_critic_kernel(%arg0: i32, %arg1: memref<16x128xbf16, #tpu.memory_space<vmem>>, %arg2: memref<32x16xbf16, #tpu.memory_space<vmem>>, %arg3: memref<32x1xf32, #tpu.memory_space<vmem>>, %arg4: memref<32x32xbf16, #tpu.memory_space<vmem>>, %arg5: memref<32x1xf32, #tpu.memory_space<vmem>>, %arg6: memref<32x1xf32, #tpu.memory_space<vmem>>, %arg7: memref<1x1x128xf32, #tpu.memory_space<vmem>>) attributes {dimension_semantics = [#tpu.dimension_semantics<parallel>], iteration_bounds = array<i64: 1>, scalar_prefetch = 0 : i64, scratch_operands = 0 : i64, tpu.core_type = #tpu.core_type<tc>, window_params = [{transform_indices = @transform_0, window_bounds = array<i64: 16, 128>}, {pipeline_mode = #tpu.pipeline_mode<synchronous>, transform_indices = @transform_1, window_bounds = array<i64: 32, 16>}, {pipeline_mode = #tpu.pipeline_mode<synchronous>, transform_indices = @transform_2, window_bounds = array<i64: 32, 1>}, {pipeline_mode = #tpu.pipeline_mode<synchronous>, transform_indices = @transform_3, window_bounds = array<i64: 32, 32>}, {pipeline_mode = #tpu.pipeline_mode<synchronous>, transform_indices = @transform_4, window_bounds = array<i64: 32, 1>}, {pipeline_mode = #tpu.pipeline_mode<synchronous>, transform_indices = @transform_5, window_bounds = array<i64: 32, 1>}, {transform_indices = @transform_6, window_bounds = array<i64: 1, 1, 128>}]} {
    %c0 = arith.constant 0 : index
    %c0_0 = arith.constant 0 : index
    %0 = vector.load %arg1[%c0, %c0_0] : memref<16x128xbf16, #tpu.memory_space<vmem>>, vector<16x128xbf16>
    %c0_1 = arith.constant 0 : index
    %c0_2 = arith.constant 0 : index
    %1 = vector.load %arg2[%c0_1, %c0_2] : memref<32x16xbf16, #tpu.memory_space<vmem>>, vector<32x16xbf16>
    %cst = arith.constant dense<0.000000e+00> : vector<32x128xf32>
    %2 = tpu.matmul %1, %0, %cst {dimension_numbers = #tpu.dot_dimension_numbers<[1], [0], [0], [1], [0, 0, 1, 1], [], []>} : vector<32x16xbf16>, vector<16x128xbf16>, vector<32x128xf32> -> vector<32x128xf32>
    %c0_3 = arith.constant 0 : index
    %c0_4 = arith.constant 0 : index
    %3 = vector.load %arg3[%c0_3, %c0_4] : memref<32x1xf32, #tpu.memory_space<vmem>>, vector<32x1xf32>
    %4 = vector.broadcast %3 : vector<32x1xf32> to vector<32x128xf32>
    %5 = arith.addf %2, %4 : vector<32x128xf32>
    %cst_5 = arith.constant 0.000000e+00 : f32
    %6 = vector.broadcast %cst_5 : f32 to vector<32x128xf32>
    %7 = arith.maximumf %5, %6 : vector<32x128xf32>
    %c0_6 = arith.constant 0 : index
    %c0_7 = arith.constant 0 : index
    %8 = vector.load %arg4[%c0_6, %c0_7] : memref<32x32xbf16, #tpu.memory_space<vmem>>, vector<32x32xbf16>
    %9 = arith.truncf %7 : vector<32x128xf32> to vector<32x128xbf16>
    %cst_8 = arith.constant dense<0.000000e+00> : vector<32x128xf32>
    %10 = tpu.matmul %8, %9, %cst_8 {dimension_numbers = #tpu.dot_dimension_numbers<[1], [0], [0], [1], [0, 0, 1, 1], [], []>} : vector<32x32xbf16>, vector<32x128xbf16>, vector<32x128xf32> -> vector<32x128xf32>
    %c0_9 = arith.constant 0 : index
    %c0_10 = arith.constant 0 : index
    %11 = vector.load %arg5[%c0_9, %c0_10] : memref<32x1xf32, #tpu.memory_space<vmem>>, vector<32x1xf32>
    %12 = vector.broadcast %11 : vector<32x1xf32> to vector<32x128xf32>
    %13 = arith.addf %10, %12 : vector<32x128xf32>
    %cst_11 = arith.constant 0.000000e+00 : f32
    %14 = vector.broadcast %cst_11 : f32 to vector<32x128xf32>
    %15 = arith.maximumf %13, %14 : vector<32x128xf32>
    %c0_12 = arith.constant 0 : index
    %c0_13 = arith.constant 0 : index
    %16 = vector.load %arg6[%c0_12, %c0_13] : memref<32x1xf32, #tpu.memory_space<vmem>>, vector<32x1xf32>
    %17 = vector.broadcast %16 : vector<32x1xf32> to vector<32x128xf32>
    %18 = arith.mulf %15, %17 : vector<32x128xf32>
    %cst_14 = arith.constant dense<0.000000e+00> : vector<128xf32>
    %19 = vector.multi_reduction <add>, %18, %cst_14 [0] : vector<32x128xf32> to vector<128xf32>
    %20 = vector.shape_cast %19 : vector<128xf32> to vector<1x128xf32>
    %21 = vector.shape_cast %20 : vector<1x128xf32> to vector<1x1x128xf32>
    %c0_15 = arith.constant 0 : index
    %c0_16 = arith.constant 0 : index
    %c0_17 = arith.constant 0 : index
    %22 = vector.load %arg7[%c0_15, %c0_16, %c0_17] : memref<1x1x128xf32, #tpu.memory_space<vmem>>, vector<1x1x128xf32>
    tpu.vector_store %arg7[%c0_15, %c0_16, %c0_17], %21 {strides = array<i32>} : memref<1x1x128xf32, #tpu.memory_space<vmem>>, vector<1x1x128xf32>,
    return
  }
  func.func @transform_0(%arg0: i32) -> (i32, i32) {
    %c0_i32 = arith.constant 0 : i32
    %c0_i32_0 = arith.constant 0 : i32
    return %c0_i32, %arg0 : i32, i32
  }
  func.func @transform_1(%arg0: i32) -> (i32, i32) {
    %c0_i32 = arith.constant 0 : i32
    %c0_i32_0 = arith.constant 0 : i32
    %c0_i32_1 = arith.constant 0 : i32
    return %c0_i32, %c0_i32_0 : i32, i32
  }
  func.func @transform_2(%arg0: i32) -> (i32, i32) {
    %c0_i32 = arith.constant 0 : i32
    %c0_i32_0 = arith.constant 0 : i32
    %c0_i32_1 = arith.constant 0 : i32
    return %c0_i32, %c0_i32_0 : i32, i32
  }
  func.func @transform_3(%arg0: i32) -> (i32, i32) {
    %c0_i32 = arith.constant 0 : i32
    %c0_i32_0 = arith.constant 0 : i32
    %c0_i32_1 = arith.constant 0 : i32
    return %c0_i32, %c0_i32_0 : i32, i32
  }
  func.func @transform_4(%arg0: i32) -> (i32, i32) {
    %c0_i32 = arith.constant 0 : i32
    %c0_i32_0 = arith.constant 0 : i32
    %c0_i32_1 = arith.constant 0 : i32
    return %c0_i32, %c0_i32_0 : i32, i32
  }
  func.func @transform_5(%arg0: i32) -> (i32, i32) {
    %c0_i32 = arith.constant 0 : i32
    %c0_i32_0 = arith.constant 0 : i32
    %c0_i32_1 = arith.constant 0 : i32
    return %c0_i32, %c0_i32_0 : i32, i32
  }
  func.func @transform_6(%arg0: i32) -> (i32, i32, i32) {
    %c0_i32 = arith.constant 0 : i32
    %c0_i32_0 = arith.constant 0 : i32
    %c0_i32_1 = arith.constant 0 : i32
    return %arg0, %c0_i32, %c0_i32_0 : i32, i32, i32
  }
}

</mosaic_0001>

<llo_original>
// kernel: shared_critic_forward.1
$region0: #{shared_critic_forward.1}
  #allocation0 [shape = 'u32[]', space=smem, size = 0x4, offset = 0x4, fixed_abs, tag = 'smem constant byte address 0x4 - core index']
  #allocation1 [shape = 'u32[144,128]{1,0:T(1,128)}', space=vmem, size = 0x12000, scoped, tag = 'internal scratch']
  %s0 = inlined_call_operand.vmem [shape: bf16[16,128], index: 0, kind: input, shape index: {}]
  %s1 = inlined_call_operand.vmem [shape: bf16[32,16], index: 1, kind: input, shape index: {}]
  %s2 = inlined_call_operand.vmem [shape: f32[32,1], index: 2, kind: input, shape index: {}]
  %s3 = inlined_call_operand.vmem [shape: bf16[32,32], index: 3, kind: input, shape index: {}]
  %s4 = inlined_call_operand.vmem [shape: f32[32,1], index: 4, kind: input, shape index: {}]
  %s5 = inlined_call_operand.vmem [shape: f32[32,1], index: 5, kind: input, shape index: {}]
  %s6 = inlined_call_operand.vmem [shape: f32[1,1,128], index: 6, kind: output, shape index: {}]
  %s7 = sld [smem:[#allocation0]]
  $region34: #{shared_critic_forward.1} parent=0
    _
  %s9 = ssub.s32 1, %s7
  %s10 = scalar_select 0, %s9, %s7
  // Predicated region
  $region2: #{shared_critic_forward.1} parent=0 // pred_check
    _
  $region3: #{shared_critic_forward.1} parent=0 // pred_check_branch
    %12 = sbr.rel (0) target = $region5
  $region4: #{shared_critic_forward.1} parent=0 // pred_region
    _
  $region5: #{shared_critic_forward.1} parent=0 // pred_fallthru
    _
  // Predicated region
  $region6: #{shared_critic_forward.1} parent=0 // pred_check
    _
  $region7: #{shared_critic_forward.1} parent=0 // pred_check_branch
    %14 = sbr.rel (0) target = $region9
  $region8: #{shared_critic_forward.1} parent=0 // pred_region
    _
  $region9: #{shared_critic_forward.1} parent=0 // pred_fallthru
    _
  // Predicated region
  $region10: #{shared_critic_forward.1} parent=0 // pred_check
    _
  $region11: #{shared_critic_forward.1} parent=0 // pred_check_branch
    %16 = sbr.rel (0) target = $region13
  $region12: #{shared_critic_forward.1} parent=0 // pred_region
    _
  $region13: #{shared_critic_forward.1} parent=0 // pred_fallthru
    _
  // Predicated region
  $region14: #{shared_critic_forward.1} parent=0 // pred_check
    _
  $region15: #{shared_critic_forward.1} parent=0 // pred_check_branch
    %18 = sbr.rel (0) target = $region17
  $region16: #{shared_critic_forward.1} parent=0 // pred_region
    _
  $region17: #{shared_critic_forward.1} parent=0 // pred_fallthru
    _
  // Predicated region
  $region18: #{shared_critic_forward.1} parent=0 // pred_check
    _
  $region19: #{shared_critic_forward.1} parent=0 // pred_check_branch
    %20 = sbr.rel (0) target = $region21
  $region20: #{shared_critic_forward.1} parent=0 // pred_region
    _
  $region21: #{shared_critic_forward.1} parent=0 // pred_fallthru
    _
  // Predicated region
  $region22: #{shared_critic_forward.1} parent=0 // pred_check
    _
  $region23: #{shared_critic_forward.1} parent=0 // pred_check_branch
    %22 = sbr.rel (0) target = $region25
  $region24: #{shared_critic_forward.1} parent=0 // pred_region
    _
  $region25: #{shared_critic_forward.1} parent=0 // pred_fallthru
    _
  %v24 = vld [vmem:[%s0] sm:$0xf]
  %v25 = vld [vmem:[%s0 + $0x4] sm:$0xf]
  %v26 = vld [vmem:[%s1] sm:$0xf]
  %v27 = vld [vmem:[%s1 + $0x4] sm:$0xf]
  %v28 = vld [vmem:[%s1 + $0x8] sm:$0xf]
  %v29 = vld [vmem:[%s1 + $0xc] sm:$0xf]
  %v30 = vld [vmem:[%s2] sm:$0xff]
  %v31 = vld [vmem:[%s2 + $0x8] sm:$0xff]
  %v32 = vld [vmem:[%s2 + $0x10] sm:$0xff]
  %v33 = vld [vmem:[%s2 + $0x18] sm:$0xff]
  %35 = vset.pattern.permute.xlu0 0
  %36 = vperm.xlu0 %35, %v30
  %v37 = vpop.permute.xlu0 %36
  %40 = vset.pattern.permute.xlu0 0
  %41 = vperm.xlu0 %40, %v31
  %v42 = vpop.permute.xlu0 %41
  %45 = vset.pattern.permute.xlu0 0
  %46 = vperm.xlu0 %45, %v32
  %v47 = vpop.permute.xlu0 %46
  %50 = vset.pattern.permute.xlu0 0
  %51 = vperm.xlu0 %50, %v33
  %v52 = vpop.permute.xlu0 %51
  %v58 = vunpack.c.l.b16 %v26
  %v59 = vunpack.c.l.b16 %v27
  %v60 = vunpack.c.l.b16 %v28
  %v61 = vunpack.c.l.b16 %v29
  %v62 = vpack.c.b16 %v59, %v58
  %v63 = vpack.c.b16 %v61, %v60
  %v66 = vunpack.c.l.b16 %v24
  %v67 = vunpack.c.l.b16 %v25
  %v68 = vpack.c.b16 %v67, %v66
  %vm70 = vcmask 130048
  %v72 = vsel %vm70, %v62, 0
  %v75 = vsel %vm70, %v63, 0
  %77 = vmatprep.subr.bf16.mxu0 0
  %78 = vmatpush1.bf16.msra.mxu0 %v68
  %79 = vmatprep.subr.bf16.mxu0 0
  %80 = vmatpush1.bf16.msra.mxu0 0
  %81 = vmatprep.subr.bf16.mxu0 0
  %82 = vmatpush1.bf16.msra.mxu0 0
  %83 = vmatprep.subr.bf16.mxu0 0
  %84 = vmatpush1.bf16.msra.mxu0 0
  %85 = vmatprep.subr.bf16.mxu0 0
  %86 = vmatpush1.bf16.msra.mxu0 0
  %87 = vmatprep.subr.bf16.mxu0 0
  %88 = vmatpush1.bf16.msra.mxu0 0
  %89 = vmatprep.subr.bf16.mxu0 0
  %90 = vmatpush1.bf16.msra.mxu0 0
  %91 = vmatprep.subr.bf16.mxu0 0
  %92 = vmatpush1.bf16.msra.mxu0 0
  %93 = vmatprep.subr.bf16.mxu0 0
  %94 = vmatpush1.bf16.msra.mxu0 0
  %95 = vmatprep.subr.bf16.mxu0 0
  %96 = vmatpush1.bf16.msra.mxu0 0
  %97 = vmatprep.subr.bf16.mxu0 0
  %98 = vmatpush1.bf16.msra.mxu0 0
  %99 = vmatprep.subr.bf16.mxu0 0
  %100 = vmatpush1.bf16.msra.mxu0 0
  %101 = vmatprep.subr.bf16.mxu0 0
  %102 = vmatpush1.bf16.msra.mxu0 0
  %103 = vmatprep.subr.bf16.mxu0 0
  %104 = vmatpush1.bf16.msra.mxu0 0
  %105 = vmatprep.subr.bf16.mxu0 0
  %106 = vmatpush1.bf16.msra.mxu0 0
  %107 = vmatprep.subr.bf16.mxu0 0
  %108 = vmatpush1.bf16.msra.mxu0 0
  %109 = vmatprep.mubr.bf16.mxu0 0
  %110 = vmatmul.mubr.bf16.gmra.mrb[0].mxu0 %v72
  %v111 = vpop.f32.mrb[0].mxu0
  %v112 = vadd.f32 %v37, %v111
  %v113 = vpop.f32.mrb[0].mxu0
  %v114 = vpop.f32.mrb[0].mxu0
  %v115 = vadd.f32 %v42, %v114
  %v116 = vpop.f32.mrb[0].mxu0
  %117 = vmatprep.mubr.bf16.mxu0 0
  %118 = vmatmul.mubr.bf16.gmra.mrb[0].mxu0 %v75
  %v119 = vpop.f32.mrb[0].mxu0
  %v120 = vadd.f32 %v47, %v119
  %v121 = vpop.f32.mrb[0].mxu0
  %v122 = vpop.f32.mrb[0].mxu0
  %v123 = vadd.f32 %v52, %v122
  %v124 = vpop.f32.mrb[0].mxu0
  %125 = vdwg.mxu0
  %v126 = vmax.f32 %v112, 0.0
  %v127 = vmax.f32 %v115, 0.0
  %v128 = vmax.f32 %v120, 0.0
  %v129 = vmax.f32 %v123, 0.0
  %v130 = vld [vmem:[%s3] sm:$0xf]
  %v131 = vld [vmem:[%s3 + $0x4] sm:$0xf]
  %v132 = vld [vmem:[%s3 + $0x8] sm:$0xf]
  %v133 = vld [vmem:[%s3 + $0xc] sm:$0xf]
  %v134 = vpack.c.bf16 %v127, %v126
  %v135 = vpack.c.bf16 %v129, %v128
  %v136 = vld [vmem:[%s4] sm:$0xff]
  %v137 = vld [vmem:[%s4 + $0x8] sm:$0xff]
  %v138 = vld [vmem:[%s4 + $0x10] sm:$0xff]
  %v139 = vld [vmem:[%s4 + $0x18] sm:$0xff]
  %141 = vset.pattern.permute.xlu0 0
  %142 = vperm.xlu0 %141, %v136
  %v143 = vpop.permute.xlu0 %142
  %146 = vset.pattern.permute.xlu0 0
  %147 = vperm.xlu0 %146, %v137
  %v148 = vpop.permute.xlu0 %147
  %151 = vset.pattern.permute.xlu0 0
  %152 = vperm.xlu0 %151, %v138
  %v153 = vpop.permute.xlu0 %152
  %156 = vset.pattern.permute.xlu0 0
  %157 = vperm.xlu0 %156, %v139
  %v158 = vpop.permute.xlu0 %157
  %v164 = vunpack.c.l.b16 %v130
  %v165 = vunpack.c.l.b16 %v131
  %v166 = vunpack.c.l.b16 %v132
  %v167 = vunpack.c.l.b16 %v133
  %v168 = vpack.c.b16 %v165, %v164
  %v169 = vpack.c.b16 %v167, %v166
  %vm170 = vcmask 261120
  %v172 = vsel %vm170, %v168, 0
  %v175 = vsel %vm170, %v169, 0
  %177 = vmatprep.subr.bf16.mxu0 0
  %178 = vmatpush1.bf16.msra.mxu0 %v134
  %179 = vmatprep.subr.bf16.mxu0 0
  %180 = vmatpush1.bf16.msra.mxu0 %v135
  %181 = vmatprep.subr.bf16.mxu0 0
  %182 = vmatpush1.bf16.msra.mxu0 0
  %183 = vmatprep.subr.bf16.mxu0 0
  %184 = vmatpush1.bf16.msra.mxu0 0
  %185 = vmatprep.subr.bf16.mxu0 0
  %186 = vmatpush1.bf16.msra.mxu0 0
  %187 = vmatprep.subr.bf16.mxu0 0
  %188 = vmatpush1.bf16.msra.mxu0 0
  %189 = vmatprep.subr.bf16.mxu0 0
  %190 = vmatpush1.bf16.msra.mxu0 0
  %191 = vmatprep.subr.bf16.mxu0 0
  %192 = vmatpush1.bf16.msra.mxu0 0
  %193 = vmatprep.subr.bf16.mxu0 0
  %194 = vmatpush1.bf16.msra.mxu0 0
  %195 = vmatprep.subr.bf16.mxu0 0
  %196 = vmatpush1.bf16.msra.mxu0 0
  %197 = vmatprep.subr.bf16.mxu0 0
  %198 = vmatpush1.bf16.msra.mxu0 0
  %199 = vmatprep.subr.bf16.mxu0 0
  %200 = vmatpush1.bf16.msra.mxu0 0
  %201 = vmatprep.subr.bf16.mxu0 0
  %202 = vmatpush1.bf16.msra.mxu0 0
  %203 = vmatprep.subr.bf16.mxu0 0
  %204 = vmatpush1.bf16.msra.mxu0 0
  %205 = vmatprep.subr.bf16.mxu0 0
  %206 = vmatpush1.bf16.msra.mxu0 0
  %207 = vmatprep.subr.bf16.mxu0 0
  %208 = vmatpush1.bf16.msra.mxu0 0
  %209 = vmatprep.mubr.bf16.mxu0 0
  %210 = vmatmul.mubr.bf16.gmra.mrb[0].mxu0 %v172
  %v211 = vpop.f32.mrb[0].mxu0
  %v212 = vadd.f32 %v143, %v211
  %v213 = vpop.f32.mrb[0].mxu0
  %v214 = vpop.f32.mrb[0].mxu0
  %v215 = vadd.f32 %v148, %v214
  %v216 = vpop.f32.mrb[0].mxu0
  %217 = vmatprep.mubr.bf16.mxu0 0
  %218 = vmatmul.mubr.bf16.gmra.mrb[0].mxu0 %v175
  %v219 = vpop.f32.mrb[0].mxu0
  %v220 = vadd.f32 %v153, %v219
  %v221 = vpop.f32.mrb[0].mxu0
  %v222 = vpop.f32.mrb[0].mxu0
  %v223 = vadd.f32 %v158, %v222
  %v224 = vpop.f32.mrb[0].mxu0
  %225 = vdwg.mxu0
  %v226 = vmax.f32 %v212, 0.0
  %v227 = vmax.f32 %v215, 0.0
  %v228 = vmax.f32 %v220, 0.0
  %v229 = vmax.f32 %v223, 0.0
  %v230 = vld [vmem:[%s5] sm:$0xff]
  %v231 = vld [vmem:[%s5 + $0x8] sm:$0xff]
  %v232 = vld [vmem:[%s5 + $0x10] sm:$0xff]
  %v233 = vld [vmem:[%s5 + $0x18] sm:$0xff]
  %235 = vset.pattern.permute.xlu0 0
  %236 = vperm.xlu0 %235, %v230
  %v237 = vpop.permute.xlu0 %236
  %240 = vset.pattern.permute.xlu0 0
  %241 = vperm.xlu0 %240, %v231
  %v242 = vpop.permute.xlu0 %241
  %245 = vset.pattern.permute.xlu0 0
  %246 = vperm.xlu0 %245, %v232
  %v247 = vpop.permute.xlu0 %246
  %250 = vset.pattern.permute.xlu0 0
  %251 = vperm.xlu0 %250, %v233
  %v252 = vpop.permute.xlu0 %251
  %v254 = vmul.f32 %v226, %v237
  %v255 = vmul.f32 %v227, %v242
  %v256 = vmul.f32 %v228, %v247
  %v257 = vmul.f32 %v229, %v252
  %v258 = vadd.f32 %v254, %v255
  %v259 = vadd.f32 %v258, %v256
  %v260 = vadd.f32 %v259, %v257
  %v261 = vrot.slane %v260, 4
  %v262 = vadd.f32 %v260, %v261
  %v263 = vrot.slane %v262, 2
  %v264 = vadd.f32 %v262, %v263
  %v265 = vrot.slane %v264, 1
  %v266 = vadd.f32 %v264, %v265
  %267 = vst [vmem:[%s6] sm:$0x1] %v266
  // Predicated region
  $region26: #{shared_critic_forward.1} parent=0 // pred_check
    _
  $region27: #{shared_critic_forward.1} parent=0 // pred_check_branch
    %269 = sbr.rel (0) target = $region29
  $region28: #{shared_critic_forward.1} parent=0 // pred_region
    _
  $region29: #{shared_critic_forward.1} parent=0 // pred_fallthru
    _
  // Predicated region
  $region30: #{shared_critic_forward.1} parent=0 // pred_check
    _
  $region31: #{shared_critic_forward.1} parent=0 // pred_check_branch
    %271 = sbr.rel (0) target = $region33
  $region32: #{shared_critic_forward.1} parent=0 // pred_region
    _
  $region33: #{shared_critic_forward.1} parent=0 // pred_fallthru
    _

</llo_original>
